<compile_context>
chip_gen: v7x
topology: tpu7x:2x2x1
jax: 0.10.0
libtpu: 0.0.40
codegen_flags: <defaults>
</compile_context>

<pallas_src>
import functools

import jax
import jax.numpy as jnp
from jax.experimental import pallas as pl
from jax.experimental.pallas import tpu as pltpu


_VMEM_LIMIT_BYTES = 48 * 1024 * 1024    # headroom under v7x's 64 MiB physical VMEM
_TILE_F32_BUDGET = 8 * 1024 * 1024      # per input tile, counted in f32 bytes
_MAX_SINGLE_STEP_HW = 32768             # bounds the unrolled lane-fold length
_MAX_MULTI_STEP_THW = 16384             # lane tile when hw must be split


def _cdiv(a, b):
    return -(-a // b)


def _round_up(a, m):
    return _cdiv(a, m) * m


def _pow_static(x, p):
    """x ** p for a static Python exponent p (x > 0).

    Small positive integer p -> VPU square-and-multiply chain (no EUP).
    Otherwise fall back to exp(p * log(x)).
    """
    if float(p) == int(p) and 1 <= int(p) <= 16:
        ip = int(p)
        result = None
        base = x
        while ip > 0:
            if ip & 1:
                result = base if result is None else result * base
            ip >>= 1
            if ip:
                base = base * base
        return result
    return jnp.exp(p * jnp.log(x))


def _fold128(xp, nchunks):
    """Fold a (rows, nchunks*128) value into (rows, 128) with pure VPU adds."""
    part = xp[:, 0:128]
    for c in range(1, nchunks):
        part = part + xp[:, c * 128:(c + 1) * 128]
    return part


def _lane_sum(xp, width):
    """Sum over the lane axis -> (rows, 1).

    Bulk of the work is 128-wide VPU folds; only one narrow cross-lane (XLU)
    reduce at the end.  For tiny widths just use the direct reduce.
    """
    full = (width // 128) * 128
    if full >= 256:
        s = jnp.sum(_fold128(xp[:, :full], full // 128), axis=-1, keepdims=True)
        if full < width:
            s = s + jnp.sum(xp[:, full:width], axis=-1, keepdims=True)
        return s
    return jnp.sum(xp, axis=-1, keepdims=True)


# ---------------------------------------------------------------------------
# Kernel bodies
# ---------------------------------------------------------------------------

def _gem_single_body(x_ref, o_ref, pow_fn, root_fn, inv_hw, hw, eps):
    # Whole spatial extent in one block: no accumulator, no init/finalize.
    x = x_ref[...].astype(jnp.float32)
    xp = pow_fn(jnp.maximum(x, eps))                 # clamp(min=eps) ** p
    m = _lane_sum(xp, hw) * inv_hw                   # mean over true H*W
    o_ref[...] = root_fn(m).astype(o_ref.dtype)      # m ** (1/p)


def _gem_multi_body(x_ref, o_ref, acc_ref, pow_fn, root_fn, inv_hw, hw, thw, eps):
    # Reduction (hw) axis is grid axis 1 (last); acc_ref (TR, 128) stays
    # resident across it.
    k = pl.program_id(1)

    @pl.when(k == 0)
    def _init():
        acc_ref[...] = jnp.zeros_like(acc_ref)

    x = x_ref[...].astype(jnp.float32)
    xp = pow_fn(jnp.maximum(x, eps))
    if hw % thw != 0:
        # Mask out-of-range lanes of the last reduction block (select discards
        # any garbage, including NaN, in the padded region).
        limit = hw - k * thw
        lane = jax.lax.broadcasted_iota(jnp.int32, xp.shape, dimension=1)
        xp = jnp.where(lane < limit, xp, 0.0)
    acc_ref[...] += _fold128(xp, thw // 128)         # full-width VPU adds only

    @pl.when(k == pl.num_programs(1) - 1)
    def _finalize():
        m = jnp.sum(acc_ref[...], axis=-1, keepdims=True) * inv_hw
        o_ref[...] = root_fn(m).astype(o_ref.dtype)


# Static-p kernels (VPU pow chain).
def _static_single_kernel(x_ref, o_ref, *, p, inv_p, inv_hw, hw, eps):
    _gem_single_body(
        x_ref, o_ref,
        pow_fn=lambda xc: _pow_static(xc, p),
        root_fn=lambda m: jnp.exp(jnp.log(m) * inv_p),
        inv_hw=inv_hw, hw=hw, eps=eps)


def _static_multi_kernel(x_ref, o_ref, acc_ref, *, p, inv_p, inv_hw, hw, thw, eps):
    _gem_multi_body(
        x_ref, o_ref, acc_ref,
        pow_fn=lambda xc: _pow_static(xc, p),
        root_fn=lambda m: jnp.exp(jnp.log(m) * inv_p),
        inv_hw=inv_hw, hw=hw, thw=thw, eps=eps)


# Dynamic-p kernels (p is a runtime SMEM scalar -> EUP exp/log).
def _dyn_single_kernel(p_ref, x_ref, o_ref, *, inv_hw, hw, eps):
    p = p_ref[0]
    _gem_single_body(
        x_ref, o_ref,
        pow_fn=lambda xc: jnp.exp(p * jnp.log(xc)),
        root_fn=lambda m: jnp.exp(jnp.log(m) / p),
        inv_hw=inv_hw, hw=hw, eps=eps)


def _dyn_multi_kernel(p_ref, x_ref, o_ref, acc_ref, *, inv_hw, hw, thw, eps):
    p = p_ref[0]
    _gem_multi_body(
        x_ref, o_ref, acc_ref,
        pow_fn=lambda xc: jnp.exp(p * jnp.log(xc)),
        root_fn=lambda m: jnp.exp(jnp.log(m) / p),
        inv_hw=inv_hw, hw=hw, thw=thw, eps=eps)


# ---------------------------------------------------------------------------
# Tiling / wrapper
# ---------------------------------------------------------------------------

def _choose_tiles(r, hw):
    """Pick (tr, thw, grid_r, grid_k).

    Prefer thw = hw (single reduction step).  Only split hw when it is huge.
    Row tile kept <= ~8 MiB (f32) and capped so grid_r >= 2 when r allows it
    (keeps both v7x TensorCores busy).
    """
    budget = _TILE_F32_BUDGET
    if hw <= _MAX_SINGLE_STEP_HW:
        thw, grid_k = hw, 1
    else:
        thw = min(_MAX_MULTI_STEP_THW, (budget // (8 * 4)) // 128 * 128)
        thw = max(128, thw)
        grid_k = _cdiv(hw, thw)

    tr_budget = max(8, (budget // (thw * 4)) // 8 * 8)
    if r <= 8:
        tr = r                                       # full dim (allowed even if < 8)
    else:
        tr = min(tr_budget, max(8, _round_up(_cdiv(r, 2), 8)))
    grid_r = _cdiv(r, tr)
    return tr, thw, grid_r, grid_k


def gem(x, p, eps=1e-6):
    """x: (N, C, H, W); p: Python float (static fast path) or (1,) array.
    Returns (N, C, 1, 1)."""
    n, c, h, w = x.shape
    r, hw = n * c, h * w
    x2d = x.reshape(r, hw)                           # contiguous -> free reshape
    tr, thw, grid_r, grid_k = _choose_tiles(r, hw)
    inv_hw = 1.0 / hw

    compiler_params = pltpu.CompilerParams(
        dimension_semantics=("parallel",) if grid_k == 1 else ("parallel", "arbitrary"),
        vmem_limit_bytes=_VMEM_LIMIT_BYTES)

    if grid_k == 1:
        grid = (grid_r,)
        x_spec = pl.BlockSpec((tr, thw), lambda i: (i, 0))
        o_spec = pl.BlockSpec((tr, 1), lambda i: (i, 0))
        scratch = []
    else:
        grid = (grid_r, grid_k)                      # reduction axis last
        x_spec = pl.BlockSpec((tr, thw), lambda i, k: (i, k))
        o_spec = pl.BlockSpec((tr, 1), lambda i, k: (i, 0))
        scratch = [pltpu.VMEM((tr, 128), jnp.float32)]

    out_shape = jax.ShapeDtypeStruct((r, 1), x.dtype)

    if isinstance(p, (int, float)):
        pf = float(p)
        if grid_k == 1:
            kernel = functools.partial(
                _static_single_kernel, p=pf, inv_p=1.0 / pf,
                inv_hw=inv_hw, hw=hw, eps=float(eps))
        else:
            kernel = functools.partial(
                _static_multi_kernel, p=pf, inv_p=1.0 / pf,
                inv_hw=inv_hw, hw=hw, thw=thw, eps=float(eps))
        out = pl.pallas_call(
            kernel, out_shape=out_shape, grid=grid,
            in_specs=[x_spec], out_specs=o_spec,
            scratch_shapes=scratch, compiler_params=compiler_params,
        )(x2d)
    else:
        p_arr = jnp.asarray(p, dtype=jnp.float32).reshape(1)
        if grid_k == 1:
            kernel = functools.partial(
                _dyn_single_kernel, inv_hw=inv_hw, hw=hw, eps=float(eps))
        else:
            kernel = functools.partial(
                _dyn_multi_kernel, inv_hw=inv_hw, hw=hw, thw=thw, eps=float(eps))
        out = pl.pallas_call(
            kernel, out_shape=out_shape, grid=grid,
            in_specs=[pl.BlockSpec(memory_space=pltpu.SMEM), x_spec],
            out_specs=o_spec, scratch_shapes=scratch,
            compiler_params=compiler_params,
        )(p_arr, x2d)

    return out.reshape(n, c, 1, 1)


class GeM:
    """JAX/Pallas port of the PyTorch GeM module."""

    def __init__(self, p=3.0, eps=1e-6, requires_grad=False):
        # nn.Parameter(torch.ones(1) * p, requires_grad=False): p is a frozen
        # scalar, so the static (VPU pow-chain) fast path applies; the array
        # form is kept for parity / a dynamic-p call if ever needed.
        self.p = jnp.ones((1,), dtype=jnp.float32) * p
        self._p_static = float(p)
        self.eps = eps

    def __call__(self, x):
        return gem(x, self._p_static, self.eps)


if __name__ == "__main__":
    key = jax.random.PRNGKey(0)

    # small NCHW input consistent with the module's forward
    x = jax.random.normal(key, (2, 4, 16, 16), dtype=jnp.float32)

    model = GeM(p=3.0, eps=1e-6)
    y = jax.block_until_ready(model(x))

    # reference in plain JAX
    xc = jnp.maximum(x, 1e-6)
    ref = jnp.mean(xc ** 3.0, axis=(-2, -1), keepdims=True) ** (1.0 / 3.0)
    assert y.shape == (2, 4, 1, 1), y.shape
    assert jnp.allclose(y, ref, rtol=1e-4, atol=1e-5)

    # dynamic-p (SMEM scalar) kernel path
    y_dyn = jax.block_until_ready(gem(x, jnp.ones((1,), jnp.float32) * 3.0, eps=1e-6))
    assert y_dyn.shape == (2, 4, 1, 1), y_dyn.shape
    assert jnp.allclose(y_dyn, ref, rtol=1e-4, atol=1e-5)

    # awkward shape: N*C not a multiple of 8 (row-tail discard) and H*W not a
    # multiple of 128 (full-dim lane block) — exercises the cdiv tiling path.
    key2 = jax.random.split(key)[0]
    x2 = jax.random.normal(key2, (2, 5, 14, 14), dtype=jnp.float32)
    y2 = jax.block_until_ready(gem(x2, 3.0, eps=1e-6))
    ref2 = jnp.mean(jnp.maximum(x2, 1e-6) ** 3.0,
                    axis=(-2, -1), keepdims=True) ** (1.0 / 3.0)
    assert y2.shape == (2, 5, 1, 1), y2.shape
    assert jnp.allclose(y2, ref2, rtol=1e-4, atol=1e-5)

    print("KERNEL_OK")
</pallas_src>

<mosaic_0001>
module attributes {stable_mosaic.version = 11 : i64} {
  func.func @_static_single_kernel(%arg0: i32, %arg1: memref<8x256xf32, #tpu.memory_space<vmem>>, %arg2: memref<8x1xf32, #tpu.memory_space<vmem>>) attributes {dimension_semantics = [#tpu.dimension_semantics<parallel>], iteration_bounds = array<i64: 1>, scalar_prefetch = 0 : i64, scratch_operands = 0 : i64, tpu.core_type = #tpu.core_type<tc>, window_params = [{transform_indices = @transform_0, window_bounds = array<i64: 8, 256>}, {transform_indices = @transform_1, window_bounds = array<i64: 8, 1>}]} {
    %c0 = arith.constant 0 : index
    %c0_0 = arith.constant 0 : index
    %0 = vector.load %arg1[%c0, %c0_0] : memref<8x256xf32, #tpu.memory_space<vmem>>, vector<8x256xf32>
    %cst = arith.constant 9.99999997E-7 : f32
    %1 = vector.broadcast %cst : f32 to vector<8x256xf32>
    %2 = arith.maximumf %0, %1 : vector<8x256xf32>
    %3 = arith.mulf %2, %2 : vector<8x256xf32>
    %4 = arith.mulf %2, %3 : vector<8x256xf32>
    %5 = vector.extract_strided_slice %4 {offsets = [0, 0], sizes = [8, 128], strides = [1, 1]} : vector<8x256xf32> to vector<8x128xf32>
    %6 = vector.extract_strided_slice %4 {offsets = [0, 128], sizes = [8, 128], strides = [1, 1]} : vector<8x256xf32> to vector<8x128xf32>
    %7 = arith.addf %5, %6 : vector<8x128xf32>
    %cst_1 = arith.constant dense<0.000000e+00> : vector<8xf32>
    %8 = vector.multi_reduction <add>, %7, %cst_1 [1] : vector<8x128xf32> to vector<8xf32>
    %9 = vector.shape_cast %8 : vector<8xf32> to vector<8x1xf32>
    %cst_2 = arith.constant 3.906250e-03 : f32
    %10 = vector.broadcast %cst_2 : f32 to vector<8x1xf32>
    %11 = arith.mulf %9, %10 : vector<8x1xf32>
    %12 = math.log %11 : vector<8x1xf32>
    %cst_3 = arith.constant 0.333333343 : f32
    %13 = vector.broadcast %cst_3 : f32 to vector<8x1xf32>
    %14 = arith.mulf %12, %13 : vector<8x1xf32>
    %15 = math.exp %14 : vector<8x1xf32>
    %c0_4 = arith.constant 0 : index
    %c0_5 = arith.constant 0 : index
    %16 = vector.load %arg2[%c0_4, %c0_5] : memref<8x1xf32, #tpu.memory_space<vmem>>, vector<8x1xf32>
    tpu.vector_store %arg2[%c0_4, %c0_5], %15 {strides = array<i32>} : memref<8x1xf32, #tpu.memory_space<vmem>>, vector<8x1xf32>,
    return
  }
  func.func @transform_0(%arg0: i32) -> (i32, i32) {
    %c0_i32 = arith.constant 0 : i32
    %c0_i32_0 = arith.constant 0 : i32
    return %arg0, %c0_i32 : i32, i32
  }
  func.func @transform_1(%arg0: i32) -> (i32, i32) {
    %c0_i32 = arith.constant 0 : i32
    %c0_i32_0 = arith.constant 0 : i32
    return %arg0, %c0_i32 : i32, i32
  }
}

</mosaic_0001>

<llo_original>
// kernel: tpu_custom_call.1
$region0: #{tpu_custom_call.1}
  #allocation0 [shape = 'u32[]', space=smem, size = 0x4, offset = 0x4, fixed_abs, tag = 'smem constant byte address 0x4 - core index']
  #allocation1 [shape = 'u32[144,128]{1,0:T(1,128)}', space=vmem, size = 0x12000, scoped, tag = 'internal scratch']
  %s0 = inlined_call_operand.hbm [shape: f32[8,256], index: 0, kind: input, shape index: {}]
  %s1 = inlined_call_operand.vmem [shape: f32[8,1], index: 1, kind: output, shape index: {}]
  %s2 = sld [smem:[#allocation0]]
  $region18: #{tpu_custom_call.1} parent=0
    _
  %s4 = ssub.s32 1, %s2
  %s5 = scalar_select 0, %s4, %s2
  $region1: #{tpu_custom_call.1} parent=0
    #allocation2 [shape = 'u8[8192]{0}', space=vmem, size = 0x2000, scoped, tag = 'input window, operand 0, single buffered']
    #allocation3 [shape = 's32[1]{0}', space=sflag, size = 0x4, scoped, tag = 'scoped memory for tpu_custom_call.1']
    %6 = vsyncpa [#allocation3], 0
    // Predicated region
    $region2: #{tpu_custom_call.1} parent=1 // pred_check
      _
    $region3: #{tpu_custom_call.1} parent=1 // pred_check_branch
      %8 = sbr.rel (0) target = $region5
    $region4: #{tpu_custom_call.1} parent=1 // pred_region
      %s10 = ssub.s32 256, 256
      %11 = vsyncadd [#allocation3], %s10
      %s13 = sshll.u32 [#allocation2], 4
      %s14 = int_to_ptr.vmem [resolvable:$true] %s13
      %16 = dma.hbm_to_vmem [thread:$0]  %s0, 256, %s14, [#allocation3]
    $region5: #{tpu_custom_call.1} parent=1 // pred_fallthru
      _
    // Predicated region
    $region6: #{tpu_custom_call.1} parent=1 // pred_check
      _
    $region7: #{tpu_custom_call.1} parent=1 // pred_check_branch
      %18 = sbr.rel (0) target = $region9
    $region8: #{tpu_custom_call.1} parent=1 // pred_region
      %19 = dma.done [#allocation3], 256
    $region9: #{tpu_custom_call.1} parent=1 // pred_fallthru
      _
    %v20 = vld [vmem:[#allocation2] sm:$0xff]
    %v21 = vld [vmem:[#allocation2 + $0x8] sm:$0xff]
    %v22 = vmax.f32 %v20, 1e-06
    %v23 = vmax.f32 %v21, 1e-06
    %v24 = vmul.f32 %v22, %v22
    %v25 = vmul.f32 %v23, %v23
    %v26 = vmul.f32 %v22, %v24
    %v27 = vmul.f32 %v23, %v25
    %v28 = vadd.f32 %v26, %v27
    %29 = vadd.xlane.f32.xlu0 %v28
    %v30 = vpop.xlane.xlu0 %29
    %v31 = vmul.f32 %v30, 0.00390625
    %v32 = vlog2.pop %v31
    %v33 = vmul.f32 %v32, 0.6931472
    %v34 = vmul.f32 %v33, 0.33333334
    %v35 = vmul.f32 %v34, 1.442695
    %v36 = vpow.pop %v35
    %vm37 = vcmask 7168
    %38 = vst.msk [vmem:[%s1] sm:$0xff] %vm37, %v36
    // Predicated region
    $region10: #{tpu_custom_call.1} parent=1 // pred_check
      _
    $region11: #{tpu_custom_call.1} parent=1 // pred_check_branch
      %40 = sbr.rel (0) target = $region13
    $region12: #{tpu_custom_call.1} parent=1 // pred_region
      _
    $region13: #{tpu_custom_call.1} parent=1 // pred_fallthru
      _
    // Predicated region
    $region14: #{tpu_custom_call.1} parent=1 // pred_check
      _
    $region15: #{tpu_custom_call.1} parent=1 // pred_check_branch
      %42 = sbr.rel (0) target = $region17
    $region16: #{tpu_custom_call.1} parent=1 // pred_region
      _
    $region17: #{tpu_custom_call.1} parent=1 // pred_fallthru
      _
    %43 = vsyncpa [#allocation3], 1

</llo_original>
